<compile_context>
chip_gen: v7x
topology: tpu7x:2x2x1
jax: 0.10.0
libtpu: 0.0.40
codegen_flags: <defaults>
</compile_context>

<pallas_src>
import math

import jax
import jax.numpy as jnp
from jax.experimental import pallas as pl
from jax.experimental.pallas import tpu as pltpu

LATENT_DIM = 6
HIDDEN_DIM = 10
OUTPUT_DIM = 16   # output_dim is a constructor arg; fixed small value for the demo

_LANES = 128


def _round_up(a, b):
    return -(-a // b) * b


def decoder_kernel(x_ref, w1_ref, b1_ref, w2_ref, b2_ref, w3_ref, b3_ref, out_ref):
    # h = relu(x @ W1 + b1)   (bias add / ReLU in f32; cast only at matmul boundaries)
    h = jnp.dot(x_ref[...], w1_ref[...], preferred_element_type=jnp.float32)
    h = jnp.maximum(h + b1_ref[...], 0.0)
    # h = relu(h @ W2 + b2)
    h = jnp.dot(h.astype(w2_ref.dtype), w2_ref[...], preferred_element_type=jnp.float32)
    h = jnp.maximum(h + b2_ref[...], 0.0)
    # x_hat = h @ W3 + b3   (no final activation, matching the PyTorch module)
    y = jnp.dot(h.astype(w3_ref.dtype), w3_ref[...], preferred_element_type=jnp.float32)
    out_ref[...] = (y + b3_ref[...]).astype(out_ref.dtype)


def decoder_forward(x, params, *, block_rows=4096, compute_dtype=None):
    """x: (B, latent_dim). params: W1/b1, W2/b2, W3/b3 with W as (in, out), b as (1, out)."""
    w1, b1 = params["W1"], params["b1"]
    w2, b2 = params["W2"], params["b2"]
    w3, b3 = params["W3"], params["b3"]
    latent = w1.shape[0]
    out_dim = w3.shape[1]
    assert x.shape[1] == latent

    dtype = compute_dtype if compute_dtype is not None else x.dtype

    # Pack `g` batch rows per slab row so the kernel output width (g*out_dim) is a
    # multiple of 128 lanes -> dense vector stores (biggest measured lever).
    g = _LANES // math.gcd(_LANES, out_dim)

    b_in = x.shape[0]
    s = -(-b_in // g)                           # slab rows needed
    ts = min(block_rows, _round_up(s, 8))       # slab-row tile (multiple of 8)
    s_pad = _round_up(s, ts)
    b_pad = s_pad * g

    if b_pad != b_in:
        x = jnp.pad(x, ((0, b_pad - b_in), (0, 0)))
    x_slab = x.astype(dtype).reshape(s_pad, g * latent)   # zero-copy row-major repack

    # Block-diagonal weights act on slab rows: y_slab = x_slab @ kron(I_g, W) + tile(b, g).
    eye = jnp.eye(g, dtype=jnp.float32)
    w1b = jnp.kron(eye, w1).astype(dtype)
    w2b = jnp.kron(eye, w2).astype(dtype)
    w3b = jnp.kron(eye, w3).astype(dtype)
    b1b = jnp.tile(b1.astype(jnp.float32), (1, g))
    b2b = jnp.tile(b2.astype(jnp.float32), (1, g))
    b3b = jnp.tile(b3.astype(jnp.float32), (1, g))

    # Weights/biases: full-array blocks with a constant index_map -> resident in VMEM.
    def resident(a):
        return pl.BlockSpec(a.shape, lambda i: (0, 0))

    out_slab = pl.pallas_call(
        decoder_kernel,
        out_shape=jax.ShapeDtypeStruct((s_pad, g * out_dim), jnp.float32),
        grid=(s_pad // ts,),
        in_specs=[
            pl.BlockSpec((ts, g * latent), lambda i: (i, 0)),
            resident(w1b), resident(b1b),
            resident(w2b), resident(b2b),
            resident(w3b), resident(b3b),
        ],
        out_specs=pl.BlockSpec((ts, g * out_dim), lambda i: (i, 0)),
        compiler_params=pltpu.CompilerParams(
            dimension_semantics=("parallel",),      # shard batch tiles across TCs (v7x)
            vmem_limit_bytes=32 * 1024 * 1024,      # >> ~6 MiB used; safe on v5e/v6e/v7x
        ),
    )(x_slab, w1b, b1b, w2b, b2b, w3b, b3b)

    return out_slab.reshape(b_pad, out_dim)[:b_in]


def init_params(key, latent_dim, hidden_dim, output_dim):
    """Deterministic PyTorch-Linear-style init: U(-1/sqrt(fan_in), 1/sqrt(fan_in))."""
    ks = jax.random.split(key, 6)

    def linear(kw, kb, fan_in, fan_out):
        bound = 1.0 / jnp.sqrt(fan_in)
        W = jax.random.uniform(kw, (fan_in, fan_out), jnp.float32, -bound, bound)
        b = jax.random.uniform(kb, (1, fan_out), jnp.float32, -bound, bound)
        return W, b

    W1, b1 = linear(ks[0], ks[1], latent_dim, hidden_dim)
    W2, b2 = linear(ks[2], ks[3], hidden_dim, hidden_dim)
    W3, b3 = linear(ks[4], ks[5], hidden_dim, output_dim)
    return {"W1": W1, "b1": b1, "W2": W2, "b2": b2, "W3": W3, "b3": b3}


def decoder_ref(x, p):
    h = jax.nn.relu(x @ p["W1"] + p["b1"])
    h = jax.nn.relu(h @ p["W2"] + p["b2"])
    return h @ p["W3"] + p["b3"]


if __name__ == "__main__":
    key = jax.random.PRNGKey(0)
    k_x, k_p = jax.random.split(key)

    batch = 64
    x = jax.random.normal(k_x, (batch, LATENT_DIM), jnp.float32)
    params = init_params(k_p, LATENT_DIM, HIDDEN_DIM, OUTPUT_DIM)
    ref = decoder_ref(x, params)

    # f32 path (single grid step at this batch size)
    out = jax.block_until_ready(decoder_forward(x, params))
    assert out.shape == (batch, OUTPUT_DIM)
    assert jnp.allclose(out, ref, atol=1e-4, rtol=1e-4), "f32 mismatch vs JAX reference"

    # ragged batch (not a multiple of the pack factor) exercises the padding path
    out_r = jax.block_until_ready(decoder_forward(x[:50], params))
    assert out_r.shape == (50, OUTPUT_DIM)
    assert jnp.allclose(out_r, ref[:50], atol=1e-4, rtol=1e-4), "ragged-batch mismatch"

    # multi-step pipelined grid (small block_rows forces >1 grid step)
    x_big = jax.random.normal(k_x, (4096, LATENT_DIM), jnp.float32)
    out_big = jax.block_until_ready(decoder_forward(x_big, params, block_rows=128))
    assert out_big.shape == (4096, OUTPUT_DIM)
    assert jnp.allclose(out_big, decoder_ref(x_big, params), atol=1e-4, rtol=1e-4), \
        "gridded-path mismatch vs JAX reference"

    # bf16 matmul path (halves dominant HBM read traffic on v6e/v7x; f32 epilogue)
    out_bf16 = jax.block_until_ready(
        decoder_forward(x, params, compute_dtype=jnp.bfloat16))
    assert out_bf16.shape == (batch, OUTPUT_DIM)
    assert jnp.allclose(out_bf16, ref, atol=5e-2, rtol=5e-2), "bf16 mismatch vs reference"

    print("KERNEL_OK")
</pallas_src>

<mosaic_0001>
module attributes {stable_mosaic.version = 11 : i64} {
  func.func @decoder_kernel(%arg0: i32, %arg1: memref<8x48xf32, #tpu.memory_space<vmem>>, %arg2: memref<48x80xf32, #tpu.memory_space<vmem>>, %arg3: memref<1x80xf32, #tpu.memory_space<vmem>>, %arg4: memref<80x80xf32, #tpu.memory_space<vmem>>, %arg5: memref<1x80xf32, #tpu.memory_space<vmem>>, %arg6: memref<80x128xf32, #tpu.memory_space<vmem>>, %arg7: memref<1x128xf32, #tpu.memory_space<vmem>>, %arg8: memref<8x128xf32, #tpu.memory_space<vmem>>) attributes {dimension_semantics = [#tpu.dimension_semantics<parallel>], iteration_bounds = array<i64: 1>, scalar_prefetch = 0 : i64, scratch_operands = 0 : i64, tpu.core_type = #tpu.core_type<tc>, window_params = [{transform_indices = @transform_0, window_bounds = array<i64: 8, 48>}, {pipeline_mode = #tpu.pipeline_mode<synchronous>, transform_indices = @transform_1, window_bounds = array<i64: 48, 80>}, {pipeline_mode = #tpu.pipeline_mode<synchronous>, transform_indices = @transform_2, window_bounds = array<i64: 1, 80>}, {pipeline_mode = #tpu.pipeline_mode<synchronous>, transform_indices = @transform_3, window_bounds = array<i64: 80, 80>}, {pipeline_mode = #tpu.pipeline_mode<synchronous>, transform_indices = @transform_4, window_bounds = array<i64: 1, 80>}, {pipeline_mode = #tpu.pipeline_mode<synchronous>, transform_indices = @transform_5, window_bounds = array<i64: 80, 128>}, {pipeline_mode = #tpu.pipeline_mode<synchronous>, transform_indices = @transform_6, window_bounds = array<i64: 1, 128>}, {transform_indices = @transform_7, window_bounds = array<i64: 8, 128>}]} {
    %c0 = arith.constant 0 : index
    %c0_0 = arith.constant 0 : index
    %0 = vector.load %arg1[%c0, %c0_0] : memref<8x48xf32, #tpu.memory_space<vmem>>, vector<8x48xf32>
    %c0_1 = arith.constant 0 : index
    %c0_2 = arith.constant 0 : index
    %1 = vector.load %arg2[%c0_1, %c0_2] : memref<48x80xf32, #tpu.memory_space<vmem>>, vector<48x80xf32>
    %cst = arith.constant dense<0.000000e+00> : vector<8x80xf32>
    %2 = tpu.matmul %0, %1, %cst {dimension_numbers = #tpu.dot_dimension_numbers<[1], [0], [0], [1], [0, 0, 1, 1], [], []>} : vector<8x48xf32>, vector<48x80xf32>, vector<8x80xf32> -> vector<8x80xf32>
    %c0_3 = arith.constant 0 : index
    %c0_4 = arith.constant 0 : index
    %3 = vector.load %arg3[%c0_3, %c0_4] : memref<1x80xf32, #tpu.memory_space<vmem>>, vector<1x80xf32>
    %4 = vector.broadcast %3 : vector<1x80xf32> to vector<8x80xf32>
    %5 = arith.addf %2, %4 : vector<8x80xf32>
    %cst_5 = arith.constant 0.000000e+00 : f32
    %6 = vector.broadcast %cst_5 : f32 to vector<8x80xf32>
    %7 = arith.maximumf %5, %6 : vector<8x80xf32>
    %c0_6 = arith.constant 0 : index
    %c0_7 = arith.constant 0 : index
    %8 = vector.load %arg4[%c0_6, %c0_7] : memref<80x80xf32, #tpu.memory_space<vmem>>, vector<80x80xf32>
    %cst_8 = arith.constant dense<0.000000e+00> : vector<8x80xf32>
    %9 = tpu.matmul %7, %8, %cst_8 {dimension_numbers = #tpu.dot_dimension_numbers<[1], [0], [0], [1], [0, 0, 1, 1], [], []>} : vector<8x80xf32>, vector<80x80xf32>, vector<8x80xf32> -> vector<8x80xf32>
    %c0_9 = arith.constant 0 : index
    %c0_10 = arith.constant 0 : index
    %10 = vector.load %arg5[%c0_9, %c0_10] : memref<1x80xf32, #tpu.memory_space<vmem>>, vector<1x80xf32>
    %11 = vector.broadcast %10 : vector<1x80xf32> to vector<8x80xf32>
    %12 = arith.addf %9, %11 : vector<8x80xf32>
    %cst_11 = arith.constant 0.000000e+00 : f32
    %13 = vector.broadcast %cst_11 : f32 to vector<8x80xf32>
    %14 = arith.maximumf %12, %13 : vector<8x80xf32>
    %c0_12 = arith.constant 0 : index
    %c0_13 = arith.constant 0 : index
    %15 = vector.load %arg6[%c0_12, %c0_13] : memref<80x128xf32, #tpu.memory_space<vmem>>, vector<80x128xf32>
    %cst_14 = arith.constant dense<0.000000e+00> : vector<8x128xf32>
    %16 = tpu.matmul %14, %15, %cst_14 {dimension_numbers = #tpu.dot_dimension_numbers<[1], [0], [0], [1], [0, 0, 1, 1], [], []>} : vector<8x80xf32>, vector<80x128xf32>, vector<8x128xf32> -> vector<8x128xf32>
    %c0_15 = arith.constant 0 : index
    %c0_16 = arith.constant 0 : index
    %17 = vector.load %arg7[%c0_15, %c0_16] : memref<1x128xf32, #tpu.memory_space<vmem>>, vector<1x128xf32>
    %18 = vector.broadcast %17 : vector<1x128xf32> to vector<8x128xf32>
    %19 = arith.addf %16, %18 : vector<8x128xf32>
    %c0_17 = arith.constant 0 : index
    %c0_18 = arith.constant 0 : index
    %20 = vector.load %arg8[%c0_17, %c0_18] : memref<8x128xf32, #tpu.memory_space<vmem>>, vector<8x128xf32>
    tpu.vector_store %arg8[%c0_17, %c0_18], %19 {strides = array<i32>} : memref<8x128xf32, #tpu.memory_space<vmem>>, vector<8x128xf32>,
    return
  }
  func.func @transform_0(%arg0: i32) -> (i32, i32) {
    %c0_i32 = arith.constant 0 : i32
    %c0_i32_0 = arith.constant 0 : i32
    return %arg0, %c0_i32 : i32, i32
  }
  func.func @transform_1(%arg0: i32) -> (i32, i32) {
    %c0_i32 = arith.constant 0 : i32
    %c0_i32_0 = arith.constant 0 : i32
    %c0_i32_1 = arith.constant 0 : i32
    return %c0_i32, %c0_i32_0 : i32, i32
  }
  func.func @transform_2(%arg0: i32) -> (i32, i32) {
    %c0_i32 = arith.constant 0 : i32
    %c0_i32_0 = arith.constant 0 : i32
    %c0_i32_1 = arith.constant 0 : i32
    return %c0_i32, %c0_i32_0 : i32, i32
  }
  func.func @transform_3(%arg0: i32) -> (i32, i32) {
    %c0_i32 = arith.constant 0 : i32
    %c0_i32_0 = arith.constant 0 : i32
    %c0_i32_1 = arith.constant 0 : i32
    return %c0_i32, %c0_i32_0 : i32, i32
  }
  func.func @transform_4(%arg0: i32) -> (i32, i32) {
    %c0_i32 = arith.constant 0 : i32
    %c0_i32_0 = arith.constant 0 : i32
    %c0_i32_1 = arith.constant 0 : i32
    return %c0_i32, %c0_i32_0 : i32, i32
  }
  func.func @transform_5(%arg0: i32) -> (i32, i32) {
    %c0_i32 = arith.constant 0 : i32
    %c0_i32_0 = arith.constant 0 : i32
    %c0_i32_1 = arith.constant 0 : i32
    return %c0_i32, %c0_i32_0 : i32, i32
  }
  func.func @transform_6(%arg0: i32) -> (i32, i32) {
    %c0_i32 = arith.constant 0 : i32
    %c0_i32_0 = arith.constant 0 : i32
    %c0_i32_1 = arith.constant 0 : i32
    return %c0_i32, %c0_i32_0 : i32, i32
  }
  func.func @transform_7(%arg0: i32) -> (i32, i32) {
    %c0_i32 = arith.constant 0 : i32
    %c0_i32_0 = arith.constant 0 : i32
    return %arg0, %c0_i32 : i32, i32
  }
}

</mosaic_0001>

<llo_original>
// kernel: tpu_custom_call.1
$region0: #{tpu_custom_call.1}
  #allocation0 [shape = 'u32[]', space=smem, size = 0x4, offset = 0x4, fixed_abs, tag = 'smem constant byte address 0x4 - core index']
  #allocation1 [shape = 'u32[144,128]{1,0:T(1,128)}', space=vmem, size = 0x12000, scoped, tag = 'internal scratch']
  %s0 = inlined_call_operand.hbm [shape: f32[8,48], index: 0, kind: input, shape index: {}]
  %s1 = inlined_call_operand.hbm [shape: f32[48,80], index: 1, kind: input, shape index: {}]
  %s2 = inlined_call_operand.vmem [shape: f32[1,80], index: 2, kind: input, shape index: {}]
  %s3 = inlined_call_operand.hbm [shape: f32[80,80], index: 3, kind: input, shape index: {}]
  %s4 = inlined_call_operand.vmem [shape: f32[1,80], index: 4, kind: input, shape index: {}]
  %s5 = inlined_call_operand.hbm [shape: f32[80,128], index: 5, kind: input, shape index: {}]
  %s6 = inlined_call_operand.vmem [shape: f32[1,128], index: 6, kind: input, shape index: {}]
  %s7 = inlined_call_operand.hbm [shape: f32[8,128], index: 7, kind: output, shape index: {}]
  %s8 = sld [smem:[#allocation0]]
  $region54: #{tpu_custom_call.1} parent=0
    _
  %s10 = ssub.s32 1, %s8
  %s11 = scalar_select 0, %s10, %s8
  $region1: #{tpu_custom_call.1} parent=0
    #allocation2 [shape = 'u8[4096]{0}', space=vmem, size = 0x1000, scoped, tag = 'input window, operand 0, single buffered']
    #allocation3 [shape = 's32[1]{0}', space=sflag, size = 0x4, scoped, tag = 'scoped memory for tpu_custom_call.1']
    #allocation4 [shape = 's32[1]{0}', space=sflag, size = 0x4, scoped, tag = 'scoped memory for tpu_custom_call.1']
    #allocation5 [shape = 'u8[24576]{0}', space=vmem, size = 0x6000, scoped, tag = 'input window, operand 1, single buffered']
    #allocation6 [shape = 's32[1]{0}', space=sflag, size = 0x4, scoped, tag = 'scoped memory for tpu_custom_call.1']
    #allocation7 [shape = 'u8[40960]{0}', space=vmem, size = 0xa000, scoped, tag = 'input window, operand 3, single buffered']
    #allocation8 [shape = 'u8[40960]{0}', space=vmem, size = 0xa000, scoped, tag = 'input window, operand 5, single buffered']
    #allocation9 [shape = 's32[1]{0}', space=sflag, size = 0x4, scoped, tag = 'scoped memory for tpu_custom_call.1']
    #allocation10 [shape = 'u8[4096]{0}', space=vmem, size = 0x1000, scoped, tag = 'output window, operand 0, single buffered']
    %12 = vsyncpa [#allocation3], 0
    %13 = vsyncpa [#allocation6], 0
    %14 = vsyncpa [#allocation9], 0
    %15 = vsyncpa [#allocation4], 0
    // Predicated region
    $region2: #{tpu_custom_call.1} parent=1 // pred_check
      _
    $region3: #{tpu_custom_call.1} parent=1 // pred_check_branch
      %17 = sbr.rel (0) target = $region5
    $region4: #{tpu_custom_call.1} parent=1 // pred_region
      %s19 = ssub.s32 128, 128
      %20 = vsyncadd [#allocation3], %s19
      %s22 = sshll.u32 [#allocation2], 4
      %s23 = int_to_ptr.vmem [resolvable:$true] %s22
      %25 = dma.hbm_to_vmem [thread:$0]  %s0, 128, %s23, [#allocation3]
    $region5: #{tpu_custom_call.1} parent=1 // pred_fallthru
      _
    // Predicated region
    $region6: #{tpu_custom_call.1} parent=1 // pred_check
      _
    $region7: #{tpu_custom_call.1} parent=1 // pred_check_branch
      %27 = sbr.rel (0) target = $region9
    $region8: #{tpu_custom_call.1} parent=1 // pred_region
      %s29 = ssub.s32 768, 768
      %30 = vsyncadd [#allocation6], %s29
      %s31 = sshll.u32 [#allocation5], 4
      %s32 = int_to_ptr.vmem [resolvable:$true] %s31
      %37 = dma.hbm_to_vmem [thread:$0]  %s1, 768, %s32, [#allocation6], 128, 128, 8
    $region9: #{tpu_custom_call.1} parent=1 // pred_fallthru
      _
    // Predicated region
    $region10: #{tpu_custom_call.1} parent=1 // pred_check
      _
    $region11: #{tpu_custom_call.1} parent=1 // pred_check_branch
      %39 = sbr.rel (0) target = $region13
    $region12: #{tpu_custom_call.1} parent=1 // pred_region
      _
    $region13: #{tpu_custom_call.1} parent=1 // pred_fallthru
      _
    // Predicated region
    $region14: #{tpu_custom_call.1} parent=1 // pred_check
      _
    $region15: #{tpu_custom_call.1} parent=1 // pred_check_branch
      %41 = sbr.rel (0) target = $region17
    $region16: #{tpu_custom_call.1} parent=1 // pred_region
      %s43 = ssub.s32 1280, 1280
      %44 = vsyncadd [#allocation6], %s43
      %s45 = sshll.u32 [#allocation7], 4
      %s46 = int_to_ptr.vmem [resolvable:$true] %s45
      %51 = dma.hbm_to_vmem [thread:$0]  %s3, 1280, %s46, [#allocation6], 128, 128, 8
    $region17: #{tpu_custom_call.1} parent=1 // pred_fallthru
      _
    // Predicated region
    $region18: #{tpu_custom_call.1} parent=1 // pred_check
      _
    $region19: #{tpu_custom_call.1} parent=1 // pred_check_branch
      %53 = sbr.rel (0) target = $region21
    $region20: #{tpu_custom_call.1} parent=1 // pred_region
      _
    $region21: #{tpu_custom_call.1} parent=1 // pred_fallthru
      _
    // Predicated region
    $region22: #{tpu_custom_call.1} parent=1 // pred_check
      _
    $region23: #{tpu_custom_call.1} parent=1 // pred_check_branch
      %55 = sbr.rel (0) target = $region25
    $region24: #{tpu_custom_call.1} parent=1 // pred_region
      %s57 = ssub.s32 1280, 1280
      %58 = vsyncadd [#allocation9], %s57
      %s59 = sshll.u32 [#allocation8], 4
      %s60 = int_to_ptr.vmem [resolvable:$true] %s59
      %65 = dma.hbm_to_vmem [thread:$0]  %s5, 1280, %s60, [#allocation9], 128, 128, 8
    $region25: #{tpu_custom_call.1} parent=1 // pred_fallthru
      _
    // Predicated region
    $region26: #{tpu_custom_call.1} parent=1 // pred_check
      _
    $region27: #{tpu_custom_call.1} parent=1 // pred_check_branch
      %67 = sbr.rel (0) target = $region29
    $region28: #{tpu_custom_call.1} parent=1 // pred_region
      _
    $region29: #{tpu_custom_call.1} parent=1 // pred_fallthru
      _
    // Predicated region
    $region30: #{tpu_custom_call.1} parent=1 // pred_check
      _
    $region31: #{tpu_custom_call.1} parent=1 // pred_check_branch
      %69 = sbr.rel (0) target = $region33
    $region32: #{tpu_custom_call.1} parent=1 // pred_region
      %70 = dma.done [#allocation3], 128
    $region33: #{tpu_custom_call.1} parent=1 // pred_fallthru
      _
    // Predicated region
    $region34: #{tpu_custom_call.1} parent=1 // pred_check
      _
    $region35: #{tpu_custom_call.1} parent=1 // pred_check_branch
      %72 = sbr.rel (0) target = $region37
    $region36: #{tpu_custom_call.1} parent=1 // pred_region
      %73 = dma.done [#allocation6], 768
    $region37: #{tpu_custom_call.1} parent=1 // pred_fallthru
      _
    // Predicated region
    $region38: #{tpu_custom_call.1} parent=1 // pred_check
      _
    $region39: #{tpu_custom_call.1} parent=1 // pred_check_branch
      %75 = sbr.rel (0) target = $region41
    $region40: #{tpu_custom_call.1} parent=1 // pred_region
      %76 = dma.done [#allocation6], 1280
    $region41: #{tpu_custom_call.1} parent=1 // pred_fallthru
      _
    // Predicated region
    $region42: #{tpu_custom_call.1} parent=1 // pred_check
      _
    $region43: #{tpu_custom_call.1} parent=1 // pred_check_branch
      %78 = sbr.rel (0) target = $region45
    $region44: #{tpu_custom_call.1} parent=1 // pred_region
      %79 = dma.done [#allocation9], 1280
    $region45: #{tpu_custom_call.1} parent=1 // pred_fallthru
      _
    %v80 = vld [vmem:[#allocation2] sm:$0xff]
    %v81 = vld [vmem:[#allocation5] sm:$0xff]
    %v82 = vld [vmem:[#allocation5 + $0x8] sm:$0xff]
    %v83 = vld [vmem:[#allocation5 + $0x10] sm:$0xff]
    %v84 = vld [vmem:[#allocation5 + $0x18] sm:$0xff]
    %v85 = vld [vmem:[#allocation5 + $0x20] sm:$0xff]
    %v86 = vld [vmem:[#allocation5 + $0x28] sm:$0xff]
    %v87 = vld [vmem:[%s2] sm:$0x1]
    %v89 = vlaneseq
    %v90 = vshrl.u32 %v89, 7
    %v91 = vsub.s32 0, %v90
    %v92 = vrot.slane %v87, %v91
    %vm94 = vcmask 392192
    %v96 = vsel %vm94, %v80, 0
    %98 = vmatprep.subr.mxu0 0.0
    %99 = vmatpush1.msra.mxu0 %v81
    %100 = vmatprep.subr.mxu0 0.0
    %101 = vmatpush1.msra.mxu0 %v82
    %102 = vmatprep.subr.mxu0 0.0
    %103 = vmatpush1.msra.mxu0 %v83
    %104 = vmatprep.subr.mxu0 0.0
    %105 = vmatpush1.msra.mxu0 %v84
    %106 = vmatprep.subr.mxu0 0.0
    %107 = vmatpush1.msra.mxu0 %v85
    %108 = vmatprep.subr.mxu0 0.0
    %109 = vmatpush1.msra.mxu0 %v86
    %110 = vmatprep.subr.mxu0 0.0
    %111 = vmatpush1.msra.mxu0 0.0
    %112 = vmatprep.subr.mxu0 0.0
    %113 = vmatpush1.msra.mxu0 0.0
    %114 = vmatprep.subr.mxu0 0.0
    %115 = vmatpush1.msra.mxu0 0.0
    %116 = vmatprep.subr.mxu0 0.0
    %117 = vmatpush1.msra.mxu0 0.0
    %118 = vmatprep.subr.mxu0 0.0
    %119 = vmatpush1.msra.mxu0 0.0
    %120 = vmatprep.subr.mxu0 0.0
    %121 = vmatpush1.msra.mxu0 0.0
    %122 = vmatprep.subr.mxu0 0.0
    %123 = vmatpush1.msra.mxu0 0.0
    %124 = vmatprep.subr.mxu0 0.0
    %125 = vmatpush1.msra.mxu0 0.0
    %126 = vmatprep.subr.mxu0 0.0
    %127 = vmatpush1.msra.mxu0 0.0
    %128 = vmatprep.subr.mxu0 0.0
    %129 = vmatpush1.msra.mxu0 0.0
    %130 = vmatprep.subr.mxu0 0.0
    %131 = vmatpush1.msra.mxu0 0.0
    %132 = vmatprep.subr.mxu0 0.0
    %133 = vmatpush1.msra.mxu0 0.0
    %134 = vmatprep.subr.mxu0 0.0
    %135 = vmatpush1.msra.mxu0 0.0
    %136 = vmatprep.subr.mxu0 0.0
    %137 = vmatpush1.msra.mxu0 0.0
    %138 = vmatprep.subr.mxu0 0.0
    %139 = vmatpush1.msra.mxu0 0.0
    %140 = vmatprep.subr.mxu0 0.0
    %141 = vmatpush1.msra.mxu0 0.0
    %142 = vmatprep.subr.mxu0 0.0
    %143 = vmatpush1.msra.mxu0 0.0
    %144 = vmatprep.subr.mxu0 0.0
    %145 = vmatpush1.msra.mxu0 0.0
    %146 = vmatprep.subr.mxu0 0.0
    %147 = vmatpush1.msra.mxu0 0.0
    %148 = vmatprep.subr.mxu0 0.0
    %149 = vmatpush1.msra.mxu0 0.0
    %150 = vmatprep.subr.mxu0 0.0
    %151 = vmatpush1.msra.mxu0 0.0
    %152 = vmatprep.subr.mxu0 0.0
    %153 = vmatpush1.msra.mxu0 0.0
    %154 = vmatprep.subr.mxu0 0.0
    %155 = vmatpush1.msra.mxu0 0.0
    %156 = vmatprep.subr.mxu0 0.0
    %157 = vmatpush1.msra.mxu0 0.0
    %158 = vmatprep.subr.mxu0 0.0
    %159 = vmatpush1.msra.mxu0 0.0
    %160 = vmatprep.subr.mxu0 0.0
    %161 = vmatpush1.msra.mxu0 0.0
    %162 = vmatprep.mubr.f32.mxu0 0.0
    %163 = vmatmul.mubr.f32.gmra.mrb[0].mxu0 %v96
    %v164 = vpop.f32.mrb[0].mxu0
    %v165 = vadd.f32 %v92, %v164
    %v166 = vpop.f32.mrb[0].mxu0
    %167 = vdwg.mxu0
    %v168 = vmax.f32 %v165, 0.0
    %v169 = vld [vmem:[#allocation7] sm:$0xff]
    %v170 = vld [vmem:[#allocation7 + $0x8] sm:$0xff]
    %v171 = vld [vmem:[#allocation7 + $0x10] sm:$0xff]
    %v172 = vld [vmem:[#allocation7 + $0x18] sm:$0xff]
    %v173 = vld [vmem:[#allocation7 + $0x20] sm:$0xff]
    %v174 = vld [vmem:[#allocation7 + $0x28] sm:$0xff]
    %v175 = vld [vmem:[#allocation7 + $0x30] sm:$0xff]
    %v176 = vld [vmem:[#allocation7 + $0x38] sm:$0xff]
    %v177 = vld [vmem:[#allocation7 + $0x40] sm:$0xff]
    %v178 = vld [vmem:[#allocation7 + $0x48] sm:$0xff]
    %v179 = vld [vmem:[%s4] sm:$0x1]
    %v181 = vlaneseq
    %v182 = vshrl.u32 %v181, 7
    %v183 = vsub.s32 0, %v182
    %v184 = vrot.slane %v179, %v183
    %vm186 = vcmask 654336
    %v188 = vsel %vm186, %v168, 0
    %190 = vmatprep.subr.mxu0 0.0
    %191 = vmatpush1.msra.mxu0 %v169
    %192 = vmatprep.subr.mxu0 0.0
    %193 = vmatpush1.msra.mxu0 %v170
    %194 = vmatprep.subr.mxu0 0.0
    %195 = vmatpush1.msra.mxu0 %v171
    %196 = vmatprep.subr.mxu0 0.0
    %197 = vmatpush1.msra.mxu0 %v172
    %198 = vmatprep.subr.mxu0 0.0
    %199 = vmatpush1.msra.mxu0 %v173
    %200 = vmatprep.subr.mxu0 0.0
    %201 = vmatpush1.msra.mxu0 %v174
    %202 = vmatprep.subr.mxu0 0.0
    %203 = vmatpush1.msra.mxu0 %v175
    %204 = vmatprep.subr.mxu0 0.0
    %205 = vmatpush1.msra.mxu0 %v176
    %206 = vmatprep.subr.mxu0 0.0
    %207 = vmatpush1.msra.mxu0 %v177
    %208 = vmatprep.subr.mxu0 0.0
    %209 = vmatpush1.msra.mxu0 %v178
    %210 = vmatprep.subr.mxu0 0.0
    %211 = vmatpush1.msra.mxu0 0.0
    %212 = vmatprep.subr.mxu0 0.0
    %213 = vmatpush1.msra.mxu0 0.0
    %214 = vmatprep.subr.mxu0 0.0
    %215 = vmatpush1.msra.mxu0 0.0
    %216 = vmatprep.subr.mxu0 0.0
    %217 = vmatpush1.msra.mxu0 0.0
    %218 = vmatprep.subr.mxu0 0.0
    %219 = vmatpush1.msra.mxu0 0.0
    %220 = vmatprep.subr.mxu0 0.0
    %221 = vmatpush1.msra.mxu0 0.0
    %222 = vmatprep.subr.mxu0 0.0
    %223 = vmatpush1.msra.mxu0 0.0
    %224 = vmatprep.subr.mxu0 0.0
    %225 = vmatpush1.msra.mxu0 0.0
    %226 = vmatprep.subr.mxu0 0.0
    %227 = vmatpush1.msra.mxu0 0.0
    %228 = vmatprep.subr.mxu0 0.0
    %229 = vmatpush1.msra.mxu0 0.0
    %230 = vmatprep.subr.mxu0 0.0
    %231 = vmatpush1.msra.mxu0 0.0
    %232 = vmatprep.subr.mxu0 0.0
    %233 = vmatpush1.msra.mxu0 0.0
    %234 = vmatprep.subr.mxu0 0.0
    %235 = vmatpush1.msra.mxu0 0.0
    %236 = vmatprep.subr.mxu0 0.0
    %237 = vmatpush1.msra.mxu0 0.0
    %238 = vmatprep.subr.mxu0 0.0
    %239 = vmatpush1.msra.mxu0 0.0
    %240 = vmatprep.subr.mxu0 0.0
    %241 = vmatpush1.msra.mxu0 0.0
    %242 = vmatprep.subr.mxu0 0.0
    %243 = vmatpush1.msra.mxu0 0.0
    %244 = vmatprep.subr.mxu0 0.0
    %245 = vmatpush1.msra.mxu0 0.0
    %246 = vmatprep.subr.mxu0 0.0
    %247 = vmatpush1.msra.mxu0 0.0
    %248 = vmatprep.subr.mxu0 0.0
    %249 = vmatpush1.msra.mxu0 0.0
    %250 = vmatprep.subr.mxu0 0.0
    %251 = vmatpush1.msra.mxu0 0.0
    %252 = vmatprep.subr.mxu0 0.0
    %253 = vmatpush1.msra.mxu0 0.0
    %254 = vmatprep.mubr.f32.mxu0 0.0
    %255 = vmatmul.mubr.f32.gmra.mrb[0].mxu0 %v188
    %v256 = vpop.f32.mrb[0].mxu0
    %v257 = vadd.f32 %v184, %v256
    %v258 = vpop.f32.mrb[0].mxu0
    %259 = vdwg.mxu0
    %v260 = vmax.f32 %v257, 0.0
    %v261 = vld [vmem:[#allocation8] sm:$0xff]
    %v262 = vld [vmem:[#allocation8 + $0x8] sm:$0xff]
    %v263 = vld [vmem:[#allocation8 + $0x10] sm:$0xff]
    %v264 = vld [vmem:[#allocation8 + $0x18] sm:$0xff]
    %v265 = vld [vmem:[#allocation8 + $0x20] sm:$0xff]
    %v266 = vld [vmem:[#allocation8 + $0x28] sm:$0xff]
    %v267 = vld [vmem:[#allocation8 + $0x30] sm:$0xff]
    %v268 = vld [vmem:[#allocation8 + $0x38] sm:$0xff]
    %v269 = vld [vmem:[#allocation8 + $0x40] sm:$0xff]
    %v270 = vld [vmem:[#allocation8 + $0x48] sm:$0xff]
    %v271 = vld [vmem:[%s6] sm:$0x1]
    %v273 = vlaneseq
    %v274 = vshrl.u32 %v273, 7
    %v275 = vsub.s32 0, %v274
    %v276 = vrot.slane %v271, %v275
    %v279 = vsel %vm186, %v260, 0
    %281 = vmatprep.subr.mxu0 0.0
    %282 = vmatpush1.msra.mxu0 %v261
    %283 = vmatprep.subr.mxu0 0.0
    %284 = vmatpush1.msra.mxu0 %v262
    %285 = vmatprep.subr.mxu0 0.0
    %286 = vmatpush1.msra.mxu0 %v263
    %287 = vmatprep.subr.mxu0 0.0
    %288 = vmatpush1.msra.mxu0 %v264
    %289 = vmatprep.subr.mxu0 0.0
    %290 = vmatpush1.msra.mxu0 %v265
    %291 = vmatprep.subr.mxu0 0.0
    %292 = vmatpush1.msra.mxu0 %v266
    %293 = vmatprep.subr.mxu0 0.0
    %294 = vmatpush1.msra.mxu0 %v267
    %295 = vmatprep.subr.mxu0 0.0
    %296 = vmatpush1.msra.mxu0 %v268
    %297 = vmatprep.subr.mxu0 0.0
    %298 = vmatpush1.msra.mxu0 %v269
    %299 = vmatprep.subr.mxu0 0.0
    %300 = vmatpush1.msra.mxu0 %v270
    %301 = vmatprep.subr.mxu0 0.0
    %302 = vmatpush1.msra.mxu0 0.0
    %303 = vmatprep.subr.mxu0 0.0
    %304 = vmatpush1.msra.mxu0 0.0
    %305 = vmatprep.subr.mxu0 0.0
    %306 = vmatpush1.msra.mxu0 0.0
    %307 = vmatprep.subr.mxu0 0.0
    %308 = vmatpush1.msra.mxu0 0.0
    %309 = vmatprep.subr.mxu0 0.0
    %310 = vmatpush1.msra.mxu0 0.0
    %311 = vmatprep.subr.mxu0 0.0
    %312 = vmatpush1.msra.mxu0 0.0
    %313 = vmatprep.subr.mxu0 0.0
    %314 = vmatpush1.msra.mxu0 0.0
    %315 = vmatprep.subr.mxu0 0.0
    %316 = vmatpush1.msra.mxu0 0.0
    %317 = vmatprep.subr.mxu0 0.0
    %318 = vmatpush1.msra.mxu0 0.0
    %319 = vmatprep.subr.mxu0 0.0
    %320 = vmatpush1.msra.mxu0 0.0
    %321 = vmatprep.subr.mxu0 0.0
    %322 = vmatpush1.msra.mxu0 0.0
    %323 = vmatprep.subr.mxu0 0.0
    %324 = vmatpush1.msra.mxu0 0.0
    %325 = vmatprep.subr.mxu0 0.0
    %326 = vmatpush1.msra.mxu0 0.0
    %327 = vmatprep.subr.mxu0 0.0
    %328 = vmatpush1.msra.mxu0 0.0
    %329 = vmatprep.subr.mxu0 0.0
    %330 = vmatpush1.msra.mxu0 0.0
    %331 = vmatprep.subr.mxu0 0.0
    %332 = vmatpush1.msra.mxu0 0.0
    %333 = vmatprep.subr.mxu0 0.0
    %334 = vmatpush1.msra.mxu0 0.0
    %335 = vmatprep.subr.mxu0 0.0
    %336 = vmatpush1.msra.mxu0 0.0
    %337 = vmatprep.subr.mxu0 0.0
    %338 = vmatpush1.msra.mxu0 0.0
    %339 = vmatprep.subr.mxu0 0.0
    %340 = vmatpush1.msra.mxu0 0.0
    %341 = vmatprep.subr.mxu0 0.0
    %342 = vmatpush1.msra.mxu0 0.0
    %343 = vmatprep.subr.mxu0 0.0
    %344 = vmatpush1.msra.mxu0 0.0
    %345 = vmatprep.mubr.f32.mxu0 0.0
    %346 = vmatmul.mubr.f32.gmra.mrb[0].mxu0 %v279
    %v347 = vpop.f32.mrb[0].mxu0
    %v348 = vadd.f32 %v276, %v347
    %v349 = vpop.f32.mrb[0].mxu0
    %350 = vdwg.mxu0
    %351 = vst [vmem:[#allocation10] sm:$0xff] %v348
    // Predicated region
    $region46: #{tpu_custom_call.1} parent=1 // pred_check
      _
    $region47: #{tpu_custom_call.1} parent=1 // pred_check_branch
      %353 = sbr.rel (0) target = $region49
    $region48: #{tpu_custom_call.1} parent=1 // pred_region
      %s355 = ssub.s32 128, 128
      %356 = vsyncadd [#allocation4], %s355
      %s358 = sshll.u32 [#allocation10], 4
      %s359 = int_to_ptr.vmem [resolvable:$true] %s358
      %361 = dma.vmem_to_hbm [thread:$0]  %s359, 128, %s7, [#allocation4]
    $region49: #{tpu_custom_call.1} parent=1 // pred_fallthru
      _
    // Predicated region
    $region50: #{tpu_custom_call.1} parent=1 // pred_check
      _
    $region51: #{tpu_custom_call.1} parent=1 // pred_check_branch
      %363 = sbr.rel (0) target = $region53
    $region52: #{tpu_custom_call.1} parent=1 // pred_region
      %364 = dma.done [#allocation4], 128
    $region53: #{tpu_custom_call.1} parent=1 // pred_fallthru
      _
    %365 = vsyncpa [#allocation3], 1
    %366 = vsyncpa [#allocation6], 1
    %367 = vsyncpa [#allocation9], 1
    %368 = vsyncpa [#allocation4], 1

</llo_original>
